<compile_context>
chip_gen: v7x
topology: tpu7x:2x2x1
jax: 0.10.0
libtpu: 0.0.40
codegen_flags: <defaults>
</compile_context>

<pallas_src>
import math

import jax
import jax.numpy as jnp
from jax.experimental import pallas as pl
from jax.experimental.pallas import tpu as pltpu


def _pool_wwn_kernel(attn_ref, x1_ref, x2_ref, y1_ref, y2_ref):
    # attn_ref: (2, ft) tile of the (lane-packed) softmax weights, already in
    # the input dtype -> no in-kernel casts; pure VPU broadcast-multiply that
    # stays hidden under the DMA pipeline.
    a = attn_ref[...]
    y1_ref[...] = a[0:1, :] * x1_ref[...]
    y2_ref[...] = a[1:2, :] * x2_ref[...]


def _pack_factor(batch, feat, lane=128):
    """Smallest k with (k*feat) % lane == 0 and batch % k == 0, else 1."""
    if feat % lane == 0:
        return 1
    k = lane // math.gcd(feat, lane)
    return k if batch % k == 0 else 1


def pool_wwn(weight, x1, x2, *, batch_tile=512, feat_tile=512):
    """Pallas implementation of Pool_wwn.forward.

    Args:
      weight: (2, num_features) parameter.
      x1, x2: (batch, num_features) inputs.
    Returns:
      (x1 * softmax(w)[0], x2 * softmax(w)[1], softmax(w)), like the PyTorch module.
    """
    B, F = x1.shape
    assert x2.shape == (B, F) and weight.shape == (2, F)
    assert x1.dtype == x2.dtype

    # Softmax over the "type" axis (size 2), hoisted out of the per-tile body.
    attn = jax.nn.softmax(weight.astype(jnp.float32), axis=0)

    # Lane-dense packing: fold k consecutive batch rows into the feature axis
    # so the last (lane) dim is a multiple of 128.
    k = _pack_factor(B, F)
    Bp, Fp = B // k, F * k
    x1p = x1.reshape(Bp, Fp)
    x2p = x2.reshape(Bp, Fp)
    attn_p = jnp.tile(attn, (1, k)).astype(x1.dtype)  # (2, Fp)

    # Tile sizes: full array when small (block == array dim is always legal),
    # otherwise (8, 128)-aligned tiles with a cdiv grid.
    bt = Bp if Bp <= batch_tile else batch_tile
    ft = Fp if Fp <= feat_tile else feat_tile
    grid = (pl.cdiv(Bp, bt), pl.cdiv(Fp, ft))

    itemsize = jnp.dtype(x1.dtype).itemsize
    cost = pl.CostEstimate(
        flops=2 * B * F,
        transcendentals=0,
        bytes_accessed=4 * B * F * itemsize + 2 * F * itemsize,
    )

    y1p, y2p = pl.pallas_call(
        _pool_wwn_kernel,
        out_shape=(
            jax.ShapeDtypeStruct((Bp, Fp), x1.dtype),
            jax.ShapeDtypeStruct((Bp, Fp), x2.dtype),
        ),
        grid_spec=pltpu.PrefetchScalarGridSpec(
            num_scalar_prefetch=0,
            grid=grid,
            in_specs=[
                pl.BlockSpec((2, ft), lambda i, j: (0, j)),   # attn rows (tiny)
                pl.BlockSpec((bt, ft), lambda i, j: (i, j)),  # x1 tile
                pl.BlockSpec((bt, ft), lambda i, j: (i, j)),  # x2 tile
            ],
            out_specs=(
                pl.BlockSpec((bt, ft), lambda i, j: (i, j)),  # y1 tile
                pl.BlockSpec((bt, ft), lambda i, j: (i, j)),  # y2 tile
            ),
        ),
        compiler_params=pltpu.CompilerParams(
            dimension_semantics=("parallel", "parallel"),
            vmem_limit_bytes=32 * 1024 * 1024,
        ),
        cost_estimate=cost,
    )(attn_p, x1p, x2p)

    y1 = y1p.reshape(B, F)
    y2 = y2p.reshape(B, F)
    return y1, y2, attn.astype(weight.dtype)


if __name__ == "__main__":
    num_features = 32
    batch = 8

    # Deterministic parameter init, matching nn.init.constant_(weight, 1.0).
    weight = jnp.ones((2, num_features), dtype=jnp.float32)

    key = jax.random.PRNGKey(0)
    k1, k2 = jax.random.split(key)
    x1 = jax.random.normal(k1, (batch, num_features), dtype=jnp.float32)
    x2 = jax.random.normal(k2, (batch, num_features), dtype=jnp.float32)

    y1, y2, attn = jax.jit(pool_wwn)(weight, x1, x2)
    jax.block_until_ready((y1, y2, attn))

    # Reference check in plain JAX (softmax over axis 0, broadcast multiply).
    a_ref = jax.nn.softmax(weight, axis=0)
    y1_ref = a_ref[0:1, :] * x1
    y2_ref = a_ref[1:2, :] * x2
    assert jnp.allclose(attn, a_ref, atol=1e-6)
    assert jnp.allclose(y1, y1_ref, atol=1e-6)
    assert jnp.allclose(y2, y2_ref, atol=1e-6)

    print("KERNEL_OK")
</pallas_src>

<mosaic_0001>
module attributes {stable_mosaic.version = 11 : i64} {
  func.func @_pool_wwn_kernel(%arg0: i32, %arg1: i32, %arg2: memref<2x128xf32, #tpu.memory_space<vmem>>, %arg3: memref<2x128xf32, #tpu.memory_space<vmem>>, %arg4: memref<2x128xf32, #tpu.memory_space<vmem>>, %arg5: memref<2x128xf32, #tpu.memory_space<vmem>>, %arg6: memref<2x128xf32, #tpu.memory_space<vmem>>) attributes {dimension_semantics = [#tpu.dimension_semantics<parallel>, #tpu.dimension_semantics<parallel>], iteration_bounds = array<i64: 1, 1>, scalar_prefetch = 0 : i64, scratch_operands = 0 : i64, tpu.core_type = #tpu.core_type<tc>, window_params = [{transform_indices = @transform_0, window_bounds = array<i64: 2, 128>}, {transform_indices = @transform_1, window_bounds = array<i64: 2, 128>}, {transform_indices = @transform_2, window_bounds = array<i64: 2, 128>}, {transform_indices = @transform_3, window_bounds = array<i64: 2, 128>}, {transform_indices = @transform_4, window_bounds = array<i64: 2, 128>}]} {
    %c0 = arith.constant 0 : index
    %c0_0 = arith.constant 0 : index
    %0 = vector.load %arg2[%c0, %c0_0] : memref<2x128xf32, #tpu.memory_space<vmem>>, vector<2x128xf32>
    %1 = vector.extract_strided_slice %0 {offsets = [0, 0], sizes = [1, 128], strides = [1, 1]} : vector<2x128xf32> to vector<1x128xf32>
    %c0_1 = arith.constant 0 : index
    %c0_2 = arith.constant 0 : index
    %2 = vector.load %arg3[%c0_1, %c0_2] : memref<2x128xf32, #tpu.memory_space<vmem>>, vector<2x128xf32>
    %3 = vector.broadcast %1 : vector<1x128xf32> to vector<2x128xf32>
    %4 = arith.mulf %3, %2 : vector<2x128xf32>
    %c0_3 = arith.constant 0 : index
    %c0_4 = arith.constant 0 : index
    %5 = vector.load %arg5[%c0_3, %c0_4] : memref<2x128xf32, #tpu.memory_space<vmem>>, vector<2x128xf32>
    tpu.vector_store %arg5[%c0_3, %c0_4], %4 {strides = array<i32>} : memref<2x128xf32, #tpu.memory_space<vmem>>, vector<2x128xf32>,
    %6 = vector.extract_strided_slice %0 {offsets = [1, 0], sizes = [1, 128], strides = [1, 1]} : vector<2x128xf32> to vector<1x128xf32>
    %c0_5 = arith.constant 0 : index
    %c0_6 = arith.constant 0 : index
    %7 = vector.load %arg4[%c0_5, %c0_6] : memref<2x128xf32, #tpu.memory_space<vmem>>, vector<2x128xf32>
    %8 = vector.broadcast %6 : vector<1x128xf32> to vector<2x128xf32>
    %9 = arith.mulf %8, %7 : vector<2x128xf32>
    %c0_7 = arith.constant 0 : index
    %c0_8 = arith.constant 0 : index
    %10 = vector.load %arg6[%c0_7, %c0_8] : memref<2x128xf32, #tpu.memory_space<vmem>>, vector<2x128xf32>
    tpu.vector_store %arg6[%c0_7, %c0_8], %9 {strides = array<i32>} : memref<2x128xf32, #tpu.memory_space<vmem>>, vector<2x128xf32>,
    return
  }
  func.func @transform_0(%arg0: i32, %arg1: i32) -> (i32, i32) {
    %c0_i32 = arith.constant 0 : i32
    %c0_i32_0 = arith.constant 0 : i32
    return %c0_i32, %arg1 : i32, i32
  }
  func.func @transform_1(%arg0: i32, %arg1: i32) -> (i32, i32) {
    %c0_i32 = arith.constant 0 : i32
    return %arg0, %arg1 : i32, i32
  }
  func.func @transform_2(%arg0: i32, %arg1: i32) -> (i32, i32) {
    %c0_i32 = arith.constant 0 : i32
    return %arg0, %arg1 : i32, i32
  }
  func.func @transform_3(%arg0: i32, %arg1: i32) -> (i32, i32) {
    %c0_i32 = arith.constant 0 : i32
    return %arg0, %arg1 : i32, i32
  }
  func.func @transform_4(%arg0: i32, %arg1: i32) -> (i32, i32) {
    %c0_i32 = arith.constant 0 : i32
    return %arg0, %arg1 : i32, i32
  }
}

</mosaic_0001>

<llo_original>
// kernel: tile.9
$region0: #{tile.9}
  %s0 = inlined_call_operand.vmem [shape: f32[2,4,32], index: 0, kind: input, shape index: {}]
  %s1 = inlined_call_operand.vmem [shape: f32[2,128], index: 1, kind: output, shape index: {}]
  $region1: #{tile.9} parent=0
    #allocation0 [shape = 'u8[4096]{0}', space=vmem, size = 0x1000, scoped, tag = 'scoped mem for output reshape']
    #allocation1 [shape = 'u8[8192]{0}', space=vmem, size = 0x2000, scoped, tag = 'scoped mem for input reshape']
    %s3 = sshllo.u32 0, 4
    %s4 = scalar_lea.vmem %s0, 4
    %v5 = vld [vmem:[%s4] sm:%s3]
    %s6 = scalar_lea.vmem [#allocation1], 8
    %7 = vst [vmem:[%s6] sm:%s3] %v5
    %v8 = vld [vmem:[%s0] sm:%s3]
    %9 = vst [vmem:[#allocation1] sm:%s3] %v8
    %s10 = smov 3
    %v11 = vld [vmem:[#allocation1] ss:$8 sm:%s10]
    %vm12 = vcmask 261120
    %13 = vst.msk [vmem:[#allocation0] sm:$0x3] %vm12, %v11
    %s14 = scalar_lea.vmem [#allocation1], 3
    %s15 = smov 3
    %v16 = vld [vmem:[%s14] ss:$8 sm:%s15]
    %17 = vrot.lane.b32.xlu0 %v16, 96
    %v18 = vpop.permute.xlu0 %17
    %vm19 = vcmask 1048320
    %20 = vst.msk [vmem:[#allocation0] sm:$0x3] %vm19, %v18
    %s21 = scalar_lea.vmem [#allocation1], 2
    %s22 = smov 3
    %v23 = vld [vmem:[%s21] ss:$8 sm:%s22]
    %24 = vrot.lane.b32.xlu0 %v23, 64
    %v25 = vpop.permute.xlu0 %24
    %vm26 = vcmask 785920
    %27 = vst.msk [vmem:[#allocation0] sm:$0x3] %vm26, %v25
    %s28 = scalar_lea.vmem [#allocation1], 1
    %s29 = smov 3
    %v30 = vld [vmem:[%s28] ss:$8 sm:%s29]
    %31 = vrot.lane.b32.xlu0 %v30, 32
    %v32 = vpop.permute.xlu0 %31
    %vm33 = vcmask 523520
    %34 = vst.msk [vmem:[#allocation0] sm:$0x3] %vm33, %v32
    %s36 = sshllo.u32 0, 2
    %v38 = vld [vmem:[#allocation0] sm:%s36]
    %s39 = sshllo.u32 0, 2
    %40 = vst [vmem:[%s1] sm:%s39] %v38

// kernel: pool_wwn.1
$region0: #{pool_wwn.1}
  #allocation0 [shape = 'u32[]', space=smem, size = 0x4, offset = 0x4, fixed_abs, tag = 'smem constant byte address 0x4 - core index']
  #allocation1 [shape = 'u32[144,128]{1,0:T(1,128)}', space=vmem, size = 0x12000, scoped, tag = 'internal scratch']
  %s0 = inlined_call_operand.vmem [shape: f32[2,128], index: 0, kind: input, shape index: {}]
  %s1 = inlined_call_operand.vmem [shape: f32[2,128], index: 1, kind: input, shape index: {}]
  %s2 = inlined_call_operand.vmem [shape: f32[2,128], index: 2, kind: input, shape index: {}]
  %s3 = inlined_call_operand.vmem [shape: f32[2,128], index: 3, kind: output, shape index: {0}]
  %s4 = inlined_call_operand.vmem [shape: f32[2,128], index: 4, kind: output, shape index: {1}]
  %5 = xla_tuple %s3, %s4
  %s6 = sld [smem:[#allocation0]]
  $region30: #{pool_wwn.1} parent=0
    _
  %s8 = ssub.s32 1, %s6
  %s9 = scalar_select 0, %s8, %s6
  // Predicated region
  $region2: #{pool_wwn.1} parent=0 // pred_check
    _
  $region3: #{pool_wwn.1} parent=0 // pred_check_branch
    %11 = sbr.rel (0) target = $region5
  $region4: #{pool_wwn.1} parent=0 // pred_region
    _
  $region5: #{pool_wwn.1} parent=0 // pred_fallthru
    _
  // Predicated region
  $region6: #{pool_wwn.1} parent=0 // pred_check
    _
  $region7: #{pool_wwn.1} parent=0 // pred_check_branch
    %13 = sbr.rel (0) target = $region9
  $region8: #{pool_wwn.1} parent=0 // pred_region
    _
  $region9: #{pool_wwn.1} parent=0 // pred_fallthru
    _
  // Predicated region
  $region10: #{pool_wwn.1} parent=0 // pred_check
    _
  $region11: #{pool_wwn.1} parent=0 // pred_check_branch
    %15 = sbr.rel (0) target = $region13
  $region12: #{pool_wwn.1} parent=0 // pred_region
    _
  $region13: #{pool_wwn.1} parent=0 // pred_fallthru
    _
  %v16 = vld [vmem:[%s0] sm:$0x3]
  %v17 = vld [vmem:[%s1] sm:$0x3]
  %v18 = vlaneseq
  %v19 = vshrl.u32 %v18, 7
  %v20 = vsub.s32 0, %v19
  %v21 = vrot.slane %v16, %v20
  %v22 = vmul.f32 %v21, %v17
  %23 = vst [vmem:[%s3] sm:$0x3] %v22
  %v24 = vld [vmem:[%s2] sm:$0x3]
  %v25 = vlaneseq
  %v26 = vshrl.u32 %v25, 7
  %v27 = vsub.s32 1, %v26
  %v28 = vrot.slane %v16, %v27
  %v29 = vmul.f32 %v28, %v24
  %30 = vst [vmem:[%s4] sm:$0x3] %v29
  // Predicated region
  $region14: #{pool_wwn.1} parent=0 // pred_check
    _
  $region15: #{pool_wwn.1} parent=0 // pred_check_branch
    %32 = sbr.rel (0) target = $region17
  $region16: #{pool_wwn.1} parent=0 // pred_region
    _
  $region17: #{pool_wwn.1} parent=0 // pred_fallthru
    _
  // Predicated region
  $region18: #{pool_wwn.1} parent=0 // pred_check
    _
  $region19: #{pool_wwn.1} parent=0 // pred_check_branch
    %34 = sbr.rel (0) target = $region21
  $region20: #{pool_wwn.1} parent=0 // pred_region
    _
  $region21: #{pool_wwn.1} parent=0 // pred_fallthru
    _
  // Predicated region
  $region22: #{pool_wwn.1} parent=0 // pred_check
    _
  $region23: #{pool_wwn.1} parent=0 // pred_check_branch
    %36 = sbr.rel (0) target = $region25
  $region24: #{pool_wwn.1} parent=0 // pred_region
    _
  $region25: #{pool_wwn.1} parent=0 // pred_fallthru
    _
  // Predicated region
  $region26: #{pool_wwn.1} parent=0 // pred_check
    _
  $region27: #{pool_wwn.1} parent=0 // pred_check_branch
    %38 = sbr.rel (0) target = $region29
  $region28: #{pool_wwn.1} parent=0 // pred_region
    _
  $region29: #{pool_wwn.1} parent=0 // pred_fallthru
    _

</llo_original>
